<compile_context>
chip_gen: v6e
topology: v6e:2x2x1
jax: 0.10.0
libtpu: 0.0.40
codegen_flags: <defaults>
</compile_context>

<pallas_src>
import math
from functools import partial

import numpy as np
import jax
import jax.numpy as jnp
from jax import lax
from jax.experimental import pallas as pl
from jax.experimental.pallas import tpu as pltpu

# ----- small, config-consistent hyperparameters (MatformerConfig fields) -----
ATOM_IN = 16        # atom_input_features
BINS = 32           # edge_features (RBF bins)
NODE_F = 32         # node_features (= out_channels of each MatformerConv)
HEADS = 4           # node_layer_head  -> H*C = 128 (lane-dense)
CONV_LAYERS = 2     # conv_layers (kept small)
FC_F = 32           # fc_features
OUT_F = 1           # output_features
LN_EPS = 1e-5
BN_EPS = 1e-5
TN = 128            # destination-node tile (clamped to N in the wrapper)


# ----------------------------- in-kernel helpers -----------------------------
def _mm(a, b):
    """Learned-weight matmul: bf16 inputs, f32 accumulation on the MXU."""
    return jnp.dot(a.astype(jnp.bfloat16), b.astype(jnp.bfloat16),
                   preferred_element_type=jnp.float32)


def _sigmoid(x):
    # single EUP push (tanh) instead of exp + reciprocal
    return 0.5 * (jnp.tanh(0.5 * x) + 1.0)


def _silu(x):
    return x * _sigmoid(x)


def _softplus(x):  # nn.Softplus(beta=1, threshold=20)
    return jnp.where(x > 20.0, x, jnp.log1p(jnp.exp(jnp.minimum(x, 20.0))))


# --------------------------------- kernels -----------------------------------
def embed_rbf_kernel(K, x_ref, rbf_ref, wemb_ref, wr1_ref, wr2_ref, vec_ref,
                     node_out_ref, edge_out_ref):
    vec = vec_ref[...]                                   # [8, C]  (b_emb, b_r1, b_r2)
    # atom embedding
    node_out_ref[...] = _mm(x_ref[...], wemb_ref[...]) + vec[0:1]

    # rbf -> Linear -> Softplus -> Linear (RBF expansion done lane-dense in wrapper)
    tn = x_ref.shape[0]
    rbf = rbf_ref[...].reshape(K * tn, BINS)             # flat, sublane-aligned reshape
    h = _softplus(_mm(rbf, wr1_ref[...]) + vec[1:2])
    edge = _mm(h, wr2_ref[...]) + vec[2:3]
    edge_out_ref[...] = edge.reshape(K, tn, NODE_F)


def matformer_conv_kernel(K, H, C,
                          x_ref, xnbr_ref, ef_ref,
                          wnode_ref, wnbr_ref, we_ref,
                          wvi_ref, wvj_ref, weu_ref, wml_ref,
                          wcat_ref, wskip_ref,
                          avg_ref, vecw_ref, vecn_ref,
                          out_ref):
    HC = H * C
    tn = x_ref.shape[0]
    inv_sqrt = 1.0 / math.sqrt(3.0 * C)
    bf = jnp.bfloat16

    vw = vecw_ref[...]          # [16, HC] packed 128-lane bias / LN rows
    vn = vecn_ref[...]          # [8, C]   packed 32-lane bias / BN rows
    avg = avg_ref[...]          # [HC, HC] per-head lane-averaging matrix (f32)

    # weights loaded once (hoisted out of the edge loop)
    w_node = wnode_ref[...]
    w_nbr = wnbr_ref[...]
    w_e = we_ref[...]
    w_vi = wvi_ref[...]
    w_vj = wvj_ref[...]
    w_eu = weu_ref[...]
    wml = wml_ref[...]

    # ---- per-destination-node work (once per tile) --------------------------
    x = x_ref[...]
    xb = x.astype(bf)                                     # hoisted bf16 cast
    nodep = jnp.dot(xb, w_node, preferred_element_type=jnp.float32)   # [tn, 3HC]
    q = nodep[:, 0 * HC:1 * HC] + vw[0:1]
    k_i = nodep[:, 1 * HC:2 * HC] + vw[1:2]
    v_i = nodep[:, 2 * HC:3 * HC] + vw[2:3]

    p1 = q * k_i * inv_sqrt
    p1sq = p1 * p1
    # value_i contribution to lin_msg_update (constant across the K edges)
    vi_proj = jnp.dot(v_i.astype(bf), w_vi, preferred_element_type=jnp.float32)

    # ---- loop over the K incoming edges of every destination node -----------
    def edge_step(k, agg):
        xj = xnbr_ref[k].astype(bf)                                     # [tn, C]
        efk = ef_ref[k].astype(bf)                                      # [tn, C]

        nbrp = jnp.dot(xj, w_nbr, preferred_element_type=jnp.float32)   # [tn, 2HC]
        k_j = nbrp[:, 0 * HC:1 * HC] + vw[1:2]
        v_j = nbrp[:, 1 * HC:2 * HC] + vw[2:3]
        e = jnp.dot(efk, w_e, preferred_element_type=jnp.float32)       # lin_edge (no bias)

        # attention gate: sigmoid(LayerNorm_{3C}(q * [k_i | k_j | e] / sqrt(3C)))
        # per-(edge, head) stats via TWO block-diagonal averaging matmuls.
        p2 = q * k_j * inv_sqrt
        p3 = q * e * inv_sqrt
        psum = p1 + p2 + p3
        psq = p1sq + p2 * p2 + p3 * p3
        mean = jnp.dot(psum, avg, preferred_element_type=jnp.float32) * (1.0 / 3.0)
        ex2 = jnp.dot(psq, avg, preferred_element_type=jnp.float32) * (1.0 / 3.0)
        inv_std = lax.rsqrt(ex2 - mean * mean + LN_EPS)
        g1 = _sigmoid((p1 - mean) * inv_std * vw[6:7] + vw[9:10])
        g2 = _sigmoid((p2 - mean) * inv_std * vw[7:8] + vw[10:11])
        g3 = _sigmoid((p3 - mean) * inv_std * vw[8:9] + vw[11:12])

        # lin_msg_update: per-head Linear(3C,3C) via block-diagonal weights
        u = (vi_proj
             + jnp.dot(v_j.astype(bf), w_vj, preferred_element_type=jnp.float32)
             + jnp.dot(e.astype(bf), w_eu, preferred_element_type=jnp.float32))
        u1 = u[:, 0 * HC:1 * HC] + vw[3:4]
        u2 = u[:, 1 * HC:2 * HC] + vw[4:5]
        u3 = u[:, 2 * HC:3 * HC] + vw[5:6]

        # msg_layer: per-head Linear(3C,C) + LayerNorm(C)
        m_pre = (jnp.dot((u1 * g1).astype(bf), wml[0 * HC:1 * HC],
                         preferred_element_type=jnp.float32)
                 + jnp.dot((u2 * g2).astype(bf), wml[1 * HC:2 * HC],
                           preferred_element_type=jnp.float32)
                 + jnp.dot((u3 * g3).astype(bf), wml[2 * HC:3 * HC],
                           preferred_element_type=jnp.float32)
                 + vw[12:13])
        mu = jnp.dot(m_pre, avg, preferred_element_type=jnp.float32)
        var = jnp.dot(m_pre * m_pre, avg, preferred_element_type=jnp.float32) - mu * mu
        msg = (m_pre - mu) * lax.rsqrt(var + LN_EPS) * vw[13:14] + vw[14:15]

        # scatter-add == accumulate over the K incoming edges
        return agg + msg

    agg = lax.fori_loop(0, K, edge_step, jnp.zeros((tn, HC), jnp.float32))

    # ---- lin_concate -> BatchNorm1d (eval) -> SiLU -> + lin_skip(x) ----------
    # TODO(synk): training-mode batch statistics for BatchNorm1d are not reproduced
    # (eval mode with running_mean=0, running_var=1 is folded into scale/shift).
    out = jnp.dot(agg.astype(bf), wcat_ref[...],
                  preferred_element_type=jnp.float32) + vn[0:1]
    out = out * vn[2:3] + vn[3:4]
    out = _silu(out)
    out_ref[...] = out + jnp.dot(xb, wskip_ref[...],
                                 preferred_element_type=jnp.float32) + vn[1:2]


def pool_fc_kernel(x_ref, pool_ref, wfc_ref, wo_ref, vec_ref, out_ref):
    feat = jnp.dot(pool_ref[...], x_ref[...],
                   preferred_element_type=jnp.float32)        # scatter-mean per graph [B, C]
    h = _silu(_mm(feat, wfc_ref[...]) + vec_ref[0:1, :])      # fc: Linear + SiLU
    out_ref[...] = _mm(h, wo_ref[...]) + vec_ref[1:2, 0:OUT_F]  # fc_out


# ----------------------------- parameter init --------------------------------
class KeyGen:
    def __init__(self, seed):
        self.key = jax.random.PRNGKey(seed)

    def __call__(self):
        self.key, sub = jax.random.split(self.key)
        return sub


def _uniform(key, shape, bound):
    return jax.random.uniform(key, shape, dtype=jnp.float32, minval=-bound, maxval=bound)


def linear_init(kg, in_f, out_f, bias=True):
    bound = 1.0 / math.sqrt(in_f)
    wT = _uniform(kg(), (in_f, out_f), bound)   # stored pre-transposed: y = x @ wT + b
    b = _uniform(kg(), (1, out_f), bound) if bias else None
    return wT, b


def init_params():
    kg = KeyGen(0)
    H, C = HEADS, NODE_F
    p = {}
    p['emb_wT'], p['emb_b'] = linear_init(kg, ATOM_IN, NODE_F)
    p['rbf1_wT'], p['rbf1_b'] = linear_init(kg, BINS, NODE_F)
    p['rbf2_wT'], p['rbf2_b'] = linear_init(kg, NODE_F, NODE_F)
    layers = []
    for _ in range(CONV_LAYERS):
        lp = {}
        lp['wkT'], lp['bk'] = linear_init(kg, NODE_F, H * C)
        lp['wqT'], lp['bq'] = linear_init(kg, NODE_F, H * C)
        lp['wvT'], lp['bv'] = linear_init(kg, NODE_F, H * C)
        lp['weT'], _ = linear_init(kg, NODE_F, H * C, bias=False)
        lp['wskipT'], lp['bskip'] = linear_init(kg, NODE_F, C)
        lp['wcatT'], lp['bcat'] = linear_init(kg, H * C, C)
        lp['wmsgT'], lp['bmsg'] = linear_init(kg, 3 * C, 3 * C)
        lp['wmlT'], lp['bml'] = linear_init(kg, 3 * C, C)
        lp['lnm_g'] = jnp.ones((1, C), jnp.float32)
        lp['lnm_b'] = jnp.zeros((1, C), jnp.float32)
        lp['ln3_g'] = jnp.ones((1, 3 * C), jnp.float32)
        lp['ln3_b'] = jnp.zeros((1, 3 * C), jnp.float32)
        lp['bn_g'] = jnp.ones((1, C), jnp.float32)
        lp['bn_b'] = jnp.zeros((1, C), jnp.float32)
        layers.append(lp)
    p['layers'] = layers
    p['fc_wT'], p['fc_b'] = linear_init(kg, NODE_F, FC_F)
    p['fcout_wT'], p['fcout_b'] = linear_init(kg, FC_F, OUT_F)
    return p


# --------------------- kernel-layout parameter preparation -------------------
def prepare_params(raw):
    H, C = HEADS, NODE_F
    HC = H * C
    bf = jnp.bfloat16
    eye = jnp.eye(H, dtype=jnp.float32)

    def bd(block):  # [C, C] per-head-shared block -> [HC, HC] block diagonal
        return jnp.kron(eye, block)

    def tile_h(v):  # [1, C] -> [1, H*C] (head-major lane layout)
        return jnp.tile(v, (1, H))

    prep = {}
    prep['emb'] = dict(
        w_emb=raw['emb_wT'].astype(bf),
        w_r1=raw['rbf1_wT'].astype(bf),
        w_r2=raw['rbf2_wT'].astype(bf),
        vec=jnp.concatenate([raw['emb_b'], raw['rbf1_b'], raw['rbf2_b'],
                             jnp.zeros((5, NODE_F), jnp.float32)], axis=0))

    layers = []
    for lp in raw['layers']:
        w_node = jnp.concatenate([lp['wqT'], lp['wkT'], lp['wvT']], axis=1)   # [C, 3HC]
        w_nbr = jnp.concatenate([lp['wkT'], lp['wvT']], axis=1)               # [C, 2HC]
        wmsg = lp['wmsgT']                                                    # [3C, 3C]
        w_vi = jnp.concatenate([bd(wmsg[0 * C:1 * C, c * C:(c + 1) * C]) for c in range(3)], axis=1)
        w_vj = jnp.concatenate([bd(wmsg[1 * C:2 * C, c * C:(c + 1) * C]) for c in range(3)], axis=1)
        w_eu = jnp.concatenate([bd(wmsg[2 * C:3 * C, c * C:(c + 1) * C]) for c in range(3)], axis=1)
        wml = lp['wmlT']                                                      # [3C, C]
        w_ml = jnp.concatenate([bd(wml[r * C:(r + 1) * C, :]) for r in range(3)], axis=0)
        avg = jnp.kron(eye, jnp.full((C, C), 1.0 / C, jnp.float32))           # per-head mean

        rows = [lp['bq'], lp['bk'], lp['bv']]
        rows += [tile_h(lp['bmsg'][:, c * C:(c + 1) * C]) for c in range(3)]
        rows += [tile_h(lp['ln3_g'][:, c * C:(c + 1) * C]) for c in range(3)]
        rows += [tile_h(lp['ln3_b'][:, c * C:(c + 1) * C]) for c in range(3)]
        rows += [tile_h(lp['bml']), tile_h(lp['lnm_g']), tile_h(lp['lnm_b']),
                 jnp.zeros((1, HC), jnp.float32)]
        vec128 = jnp.concatenate(rows, axis=0)                                # [16, HC]

        vec32 = jnp.concatenate(
            [lp['bcat'], lp['bskip'],
             lp['bn_g'] * (1.0 / math.sqrt(1.0 + BN_EPS)), lp['bn_b'],
             jnp.zeros((4, C), jnp.float32)], axis=0)                          # [8, C]

        layers.append(dict(
            w_node=w_node.astype(bf), w_nbr=w_nbr.astype(bf), w_e=lp['weT'].astype(bf),
            w_vi=w_vi.astype(bf), w_vj=w_vj.astype(bf), w_eu=w_eu.astype(bf),
            w_ml=w_ml.astype(bf), w_cat=lp['wcatT'].astype(bf),
            w_skip=lp['wskipT'].astype(bf),
            avg=avg, vec128=vec128, vec32=vec32))
    prep['layers'] = layers

    prep['pool'] = dict(
        w_fc=raw['fc_wT'].astype(bf), w_out=raw['fcout_wT'].astype(bf),
        vec=jnp.concatenate([raw['fc_b'],
                             jnp.pad(raw['fcout_b'], ((0, 0), (0, FC_F - OUT_F))),
                             jnp.zeros((6, FC_F), jnp.float32)], axis=0))
    return prep


# ------------------------ dense neighbour structure --------------------------
def build_dense_graph(edge_index, n_nodes):
    """Convert COO edges to dense per-destination format (k-nearest graphs are uniform)."""
    src = np.asarray(edge_index[0])
    dst = np.asarray(edge_index[1])
    buckets = [[] for _ in range(n_nodes)]
    for eid in range(src.shape[0]):
        buckets[int(dst[eid])].append((int(src[eid]), eid))
    degs = {len(b) for b in buckets}
    # TODO(synk): ragged in-degree would need padding + a mask; k-nearest graphs are uniform.
    assert len(degs) == 1, "non-uniform in-degree not supported"
    K = degs.pop()
    nbr_src = np.zeros((K, n_nodes), np.int32)
    edge_perm = np.zeros((K, n_nodes), np.int32)
    for i, b in enumerate(buckets):
        for k, (s, eid) in enumerate(b):
            nbr_src[k, i] = s
            edge_perm[k, i] = eid
    return jnp.asarray(nbr_src), jnp.asarray(edge_perm), K


# ----------------------------- VMEM budgeting --------------------------------
def _vmem_limit_bytes(tn, K):
    """Footprint-derived scoped-VMEM limit (kept well below v7x's 64 MiB)."""
    H, C = HEADS, NODE_F
    HC = H * C
    # bf16 weights + f32 avg/vec tables (pipeline double-buffers them)
    w_elems = (C * 3 * HC + C * 2 * HC + C * HC          # w_node, w_nbr, w_e
               + 3 * HC * 3 * HC + 3 * HC * HC           # w_vi/w_vj/w_eu, w_ml
               + HC * C + C * C)                         # w_cat, w_skip
    weights = 2 * (w_elems * 2 + HC * HC * 4 + 16 * HC * 4 + 8 * C * 4)
    # double-buffered streamed blocks: x, xnbr, ef, out (f32)
    tiles = 2 * (tn * C + 2 * K * tn * C + tn * C) * 4
    # in-kernel working set: a handful of [tn, HC] / [tn, 3HC] f32 temporaries
    live = (16 * tn * HC + 4 * tn * 3 * HC) * 4
    total = weights + tiles + live
    return int(min(max(total * 3 // 2, 16 << 20), 40 << 20))


# -------------------------------- forward ------------------------------------
def matformer_forward(prep, atom_x, rbf, nbr_src, pool_mat, K, tn=TN):
    N = atom_x.shape[0]
    C = NODE_F
    tn = min(tn, N)
    assert N % tn == 0 and tn % 8 == 0
    grid = (N // tn,)
    cparams = pltpu.CompilerParams(
        dimension_semantics=("parallel",),
        vmem_limit_bytes=_vmem_limit_bytes(tn, K))

    def full(shape):
        # constant-index (weight) blocks; single-buffering (pl.Buffered(1)) could
        # reclaim a little VMEM on v7x but is unnecessary at this footprint.
        return pl.BlockSpec(shape, lambda i: (0,) * len(shape))

    emb = prep['emb']
    node_features, edge_features = pl.pallas_call(
        partial(embed_rbf_kernel, K),
        grid=grid,
        in_specs=[pl.BlockSpec((tn, ATOM_IN), lambda i: (i, 0)),
                  pl.BlockSpec((K, tn, BINS), lambda i: (0, i, 0)),
                  full(emb['w_emb'].shape), full(emb['w_r1'].shape),
                  full(emb['w_r2'].shape), full(emb['vec'].shape)],
        out_specs=(pl.BlockSpec((tn, C), lambda i: (i, 0)),
                   pl.BlockSpec((K, tn, C), lambda i: (0, i, 0))),
        out_shape=(jax.ShapeDtypeStruct((N, C), jnp.float32),
                   jax.ShapeDtypeStruct((K, N, C), jnp.float32)),
        compiler_params=cparams,
    )(atom_x, rbf, emb['w_emb'], emb['w_r1'], emb['w_r2'], emb['vec'])

    for lp in prep['layers']:
        # TODO(synk): per-layer HBM round trip + XLA row gather kept; an in-kernel
        # DMA gather / fully-VMEM-resident feature table would be a latency win.
        x_nbr = node_features[nbr_src]                         # [K, N, C]
        ins = [node_features, x_nbr, edge_features,
               lp['w_node'], lp['w_nbr'], lp['w_e'],
               lp['w_vi'], lp['w_vj'], lp['w_eu'], lp['w_ml'],
               lp['w_cat'], lp['w_skip'], lp['avg'], lp['vec128'], lp['vec32']]
        in_specs = ([pl.BlockSpec((tn, C), lambda i: (i, 0)),
                     pl.BlockSpec((K, tn, C), lambda i: (0, i, 0)),
                     pl.BlockSpec((K, tn, C), lambda i: (0, i, 0))]
                    + [full(a.shape) for a in ins[3:]])
        node_features = pl.pallas_call(
            partial(matformer_conv_kernel, K, HEADS, NODE_F),
            grid=grid,
            in_specs=in_specs,
            out_specs=pl.BlockSpec((tn, C), lambda i: (i, 0)),
            out_shape=jax.ShapeDtypeStruct((N, C), jnp.float32),
            compiler_params=cparams,
        )(*ins)

    pp = prep['pool']
    out = pl.pallas_call(
        pool_fc_kernel,
        in_specs=[pl.BlockSpec(memory_space=pltpu.MemorySpace.VMEM)] * 5,
        out_specs=pl.BlockSpec(memory_space=pltpu.MemorySpace.VMEM),
        out_shape=jax.ShapeDtypeStruct((pool_mat.shape[0], OUT_F), jnp.float32),
    )(node_features, pool_mat, pp['w_fc'], pp['w_out'], pp['vec'])
    return out   # output_level == 'crystal'


# ---------------------------------- main --------------------------------------
if __name__ == "__main__":
    key = jax.random.PRNGKey(0)
    k1, k2 = jax.random.split(key)

    N_PER_GRAPH = 8
    NUM_GRAPHS = 2
    N = N_PER_GRAPH * NUM_GRAPHS

    # bidirectional ring graph inside each crystal -> every node has in-degree 2
    src_list, dst_list = [], []
    for g in range(NUM_GRAPHS):
        off = g * N_PER_GRAPH
        for i in range(N_PER_GRAPH):
            j = (i + 1) % N_PER_GRAPH
            src_list += [off + i, off + j]
            dst_list += [off + j, off + i]
    edge_index = np.array([src_list, dst_list], dtype=np.int32)   # [2, E]
    E = edge_index.shape[1]
    batch = np.array([g for g in range(NUM_GRAPHS) for _ in range(N_PER_GRAPH)],
                     dtype=np.int32)

    atom_x = jax.random.normal(k1, (N, ATOM_IN), dtype=jnp.float32)     # data.x
    edge_attr = jax.random.normal(k2, (E, 3), dtype=jnp.float32)        # data.edge_attr

    # dense per-destination edge layout (static graph structure)
    nbr_src, edge_perm, K = build_dense_graph(edge_index, N)

    # RBFExpansion(vmin=0, vmax=8, bins): done in the wrapper so kernels stay lane-dense.
    centers = jnp.linspace(0.0, 8.0, BINS, dtype=jnp.float32)
    gamma = (BINS - 1) / 8.0                                            # 1 / lengthscale
    ea_dense = edge_attr[edge_perm]                                     # [K, N, 3]
    d = jnp.sqrt(jnp.sum(ea_dense * ea_dense, axis=-1))                 # [K, N]
    rbf = jnp.exp(-gamma * (d[..., None] - centers) ** 2)               # [K, N, BINS]

    # per-graph mean pooling matrix  (scatter(..., reduce='mean'))
    pool_mat = jax.nn.one_hot(batch, NUM_GRAPHS, dtype=jnp.float32).T   # [B, N]
    pool_mat = pool_mat / jnp.sum(pool_mat, axis=1, keepdims=True)

    params = init_params()
    prep = prepare_params(params)

    out = matformer_forward(prep, atom_x, rbf, nbr_src, pool_mat, K)
    out = jax.block_until_ready(out)
    assert out.shape == (NUM_GRAPHS, OUT_F)
    print("KERNEL_OK")
</pallas_src>

<mosaic_0001>
module attributes {stable_mosaic.version = 11 : i64} {
  func.func @embed_rbf_kernel(%arg0: i32, %arg1: memref<16x16xf32, #tpu.memory_space<vmem>>, %arg2: memref<2x16x32xf32, #tpu.memory_space<vmem>>, %arg3: memref<16x32xbf16, #tpu.memory_space<vmem>>, %arg4: memref<32x32xbf16, #tpu.memory_space<vmem>>, %arg5: memref<32x32xbf16, #tpu.memory_space<vmem>>, %arg6: memref<8x32xf32, #tpu.memory_space<vmem>>, %arg7: memref<16x32xf32, #tpu.memory_space<vmem>>, %arg8: memref<2x16x32xf32, #tpu.memory_space<vmem>>) attributes {dimension_semantics = [#tpu.dimension_semantics<parallel>], iteration_bounds = array<i64: 1>, scalar_prefetch = 0 : i64, scratch_operands = 0 : i64, tpu.core_type = #tpu.core_type<tc>, window_params = [{transform_indices = @transform_0, window_bounds = array<i64: 16, 16>}, {transform_indices = @transform_1, window_bounds = array<i64: 2, 16, 32>}, {pipeline_mode = #tpu.pipeline_mode<synchronous>, transform_indices = @transform_2, window_bounds = array<i64: 16, 32>}, {pipeline_mode = #tpu.pipeline_mode<synchronous>, transform_indices = @transform_3, window_bounds = array<i64: 32, 32>}, {pipeline_mode = #tpu.pipeline_mode<synchronous>, transform_indices = @transform_4, window_bounds = array<i64: 32, 32>}, {pipeline_mode = #tpu.pipeline_mode<synchronous>, transform_indices = @transform_5, window_bounds = array<i64: 8, 32>}, {transform_indices = @transform_6, window_bounds = array<i64: 16, 32>}, {transform_indices = @transform_7, window_bounds = array<i64: 2, 16, 32>}]} {
    %c0 = arith.constant 0 : index
    %c0_0 = arith.constant 0 : index
    %0 = vector.load %arg6[%c0, %c0_0] : memref<8x32xf32, #tpu.memory_space<vmem>>, vector<8x32xf32>
    %c0_1 = arith.constant 0 : index
    %c0_2 = arith.constant 0 : index
    %1 = vector.load %arg1[%c0_1, %c0_2] : memref<16x16xf32, #tpu.memory_space<vmem>>, vector<16x16xf32>
    %c0_3 = arith.constant 0 : index
    %c0_4 = arith.constant 0 : index
    %2 = vector.load %arg3[%c0_3, %c0_4] : memref<16x32xbf16, #tpu.memory_space<vmem>>, vector<16x32xbf16>
    %3 = arith.truncf %1 : vector<16x16xf32> to vector<16x16xbf16>
    %cst = arith.constant dense<0.000000e+00> : vector<16x32xf32>
    %4 = tpu.matmul %3, %2, %cst {dimension_numbers = #tpu.dot_dimension_numbers<[1], [0], [0], [1], [0, 0, 1, 1], [], []>} : vector<16x16xbf16>, vector<16x32xbf16>, vector<16x32xf32> -> vector<16x32xf32>
    %5 = vector.extract_strided_slice %0 {offsets = [0, 0], sizes = [1, 32], strides = [1, 1]} : vector<8x32xf32> to vector<1x32xf32>
    %6 = vector.broadcast %5 : vector<1x32xf32> to vector<16x32xf32>
    %7 = arith.addf %4, %6 : vector<16x32xf32>
    %c0_5 = arith.constant 0 : index
    %c0_6 = arith.constant 0 : index
    %8 = vector.load %arg7[%c0_5, %c0_6] : memref<16x32xf32, #tpu.memory_space<vmem>>, vector<16x32xf32>
    tpu.vector_store %arg7[%c0_5, %c0_6], %7 {strides = array<i32>} : memref<16x32xf32, #tpu.memory_space<vmem>>, vector<16x32xf32>,
    %c0_7 = arith.constant 0 : index
    %c0_8 = arith.constant 0 : index
    %c0_9 = arith.constant 0 : index
    %9 = vector.load %arg2[%c0_7, %c0_8, %c0_9] : memref<2x16x32xf32, #tpu.memory_space<vmem>>, vector<2x16x32xf32>
    %10 = vector.shape_cast %9 : vector<2x16x32xf32> to vector<32x32xf32>
    %c0_10 = arith.constant 0 : index
    %c0_11 = arith.constant 0 : index
    %11 = vector.load %arg4[%c0_10, %c0_11] : memref<32x32xbf16, #tpu.memory_space<vmem>>, vector<32x32xbf16>
    %12 = arith.truncf %10 : vector<32x32xf32> to vector<32x32xbf16>
    %cst_12 = arith.constant dense<0.000000e+00> : vector<32x32xf32>
    %13 = tpu.matmul %12, %11, %cst_12 {dimension_numbers = #tpu.dot_dimension_numbers<[1], [0], [0], [1], [0, 0, 1, 1], [], []>} : vector<32x32xbf16>, vector<32x32xbf16>, vector<32x32xf32> -> vector<32x32xf32>
    %14 = vector.extract_strided_slice %0 {offsets = [1, 0], sizes = [1, 32], strides = [1, 1]} : vector<8x32xf32> to vector<1x32xf32>
    %15 = vector.broadcast %14 : vector<1x32xf32> to vector<32x32xf32>
    %16 = arith.addf %13, %15 : vector<32x32xf32>
    %cst_13 = arith.constant 2.000000e+01 : f32
    %17 = vector.broadcast %cst_13 : f32 to vector<32x32xf32>
    %18 = arith.cmpf ogt, %16, %17 : vector<32x32xf32>
    %cst_14 = arith.constant 2.000000e+01 : f32
    %19 = vector.broadcast %cst_14 : f32 to vector<32x32xf32>
    %20 = arith.minimumf %16, %19 : vector<32x32xf32>
    %21 = math.exp %20 : vector<32x32xf32>
    %22 = math.log1p %21 : vector<32x32xf32>
    %23 = arith.select %18, %16, %22 : vector<32x32xi1>, vector<32x32xf32>
    %c0_15 = arith.constant 0 : index
    %c0_16 = arith.constant 0 : index
    %24 = vector.load %arg5[%c0_15, %c0_16] : memref<32x32xbf16, #tpu.memory_space<vmem>>, vector<32x32xbf16>
    %25 = arith.truncf %23 : vector<32x32xf32> to vector<32x32xbf16>
    %cst_17 = arith.constant dense<0.000000e+00> : vector<32x32xf32>
    %26 = tpu.matmul %25, %24, %cst_17 {dimension_numbers = #tpu.dot_dimension_numbers<[1], [0], [0], [1], [0, 0, 1, 1], [], []>} : vector<32x32xbf16>, vector<32x32xbf16>, vector<32x32xf32> -> vector<32x32xf32>
    %27 = vector.extract_strided_slice %0 {offsets = [2, 0], sizes = [1, 32], strides = [1, 1]} : vector<8x32xf32> to vector<1x32xf32>
    %28 = vector.broadcast %27 : vector<1x32xf32> to vector<32x32xf32>
    %29 = arith.addf %26, %28 : vector<32x32xf32>
    %30 = vector.shape_cast %29 : vector<32x32xf32> to vector<2x16x32xf32>
    %c0_18 = arith.constant 0 : index
    %c0_19 = arith.constant 0 : index
    %c0_20 = arith.constant 0 : index
    %31 = vector.load %arg8[%c0_18, %c0_19, %c0_20] : memref<2x16x32xf32, #tpu.memory_space<vmem>>, vector<2x16x32xf32>
    tpu.vector_store %arg8[%c0_18, %c0_19, %c0_20], %30 {strides = array<i32>} : memref<2x16x32xf32, #tpu.memory_space<vmem>>, vector<2x16x32xf32>,
    return
  }
  func.func @transform_0(%arg0: i32) -> (i32, i32) {
    %c0_i32 = arith.constant 0 : i32
    %c0_i32_0 = arith.constant 0 : i32
    return %arg0, %c0_i32 : i32, i32
  }
  func.func @transform_1(%arg0: i32) -> (i32, i32, i32) {
    %c0_i32 = arith.constant 0 : i32
    %c0_i32_0 = arith.constant 0 : i32
    %c0_i32_1 = arith.constant 0 : i32
    return %c0_i32, %arg0, %c0_i32_0 : i32, i32, i32
  }
  func.func @transform_2(%arg0: i32) -> (i32, i32) {
    %c0_i32 = arith.constant 0 : i32
    %c0_i32_0 = arith.constant 0 : i32
    %c0_i32_1 = arith.constant 0 : i32
    return %c0_i32, %c0_i32_0 : i32, i32
  }
  func.func @transform_3(%arg0: i32) -> (i32, i32) {
    %c0_i32 = arith.constant 0 : i32
    %c0_i32_0 = arith.constant 0 : i32
    %c0_i32_1 = arith.constant 0 : i32
    return %c0_i32, %c0_i32_0 : i32, i32
  }
  func.func @transform_4(%arg0: i32) -> (i32, i32) {
    %c0_i32 = arith.constant 0 : i32
    %c0_i32_0 = arith.constant 0 : i32
    %c0_i32_1 = arith.constant 0 : i32
    return %c0_i32, %c0_i32_0 : i32, i32
  }
  func.func @transform_5(%arg0: i32) -> (i32, i32) {
    %c0_i32 = arith.constant 0 : i32
    %c0_i32_0 = arith.constant 0 : i32
    %c0_i32_1 = arith.constant 0 : i32
    return %c0_i32, %c0_i32_0 : i32, i32
  }
  func.func @transform_6(%arg0: i32) -> (i32, i32) {
    %c0_i32 = arith.constant 0 : i32
    %c0_i32_0 = arith.constant 0 : i32
    return %arg0, %c0_i32 : i32, i32
  }
  func.func @transform_7(%arg0: i32) -> (i32, i32, i32) {
    %c0_i32 = arith.constant 0 : i32
    %c0_i32_0 = arith.constant 0 : i32
    %c0_i32_1 = arith.constant 0 : i32
    return %c0_i32, %arg0, %c0_i32_0 : i32, i32, i32
  }
}

</mosaic_0001>

<llo_original>
// kernel: tpu_custom_call.1
$region0: #{tpu_custom_call.1}
  #allocation0 [shape = 'u32[]', space=smem, size = 0x4, offset = 0x4, fixed_abs, tag = 'smem constant byte address 0x4 - core index']
  #allocation1 [shape = 'u32[144,128]{1,0:T(1,128)}', space=vmem, size = 0x12000, scoped, tag = 'internal scratch']
  %s0 = inlined_call_operand.hbm [shape: f32[16,16], index: 0, kind: input, shape index: {}]
  %s1 = inlined_call_operand.hbm [shape: f32[2,16,32], index: 1, kind: input, shape index: {}]
  %s2 = inlined_call_operand.hbm [shape: bf16[16,32], index: 2, kind: input, shape index: {}]
  %s3 = inlined_call_operand.hbm [shape: bf16[32,32], index: 3, kind: input, shape index: {}]
  %s4 = inlined_call_operand.hbm [shape: bf16[32,32], index: 4, kind: input, shape index: {}]
  %s5 = inlined_call_operand.vmem [shape: f32[8,32], index: 5, kind: input, shape index: {}]
  %s6 = inlined_call_operand.hbm [shape: f32[16,32], index: 6, kind: output, shape index: {0}]
  %s7 = inlined_call_operand.hbm [shape: f32[2,16,32], index: 7, kind: output, shape index: {1}]
  %8 = xla_tuple %s6, %s7
  %s9 = sld [smem:[#allocation0]]
  $region62: #{tpu_custom_call.1} parent=0
    _
  %s11 = ssub.s32 1, %s9
  %s12 = scalar_select 0, %s11, %s9
  $region1: #{tpu_custom_call.1} parent=0
    #allocation2 [shape = 'u8[8192]{0}', space=vmem, size = 0x2000, scoped, tag = 'input window, operand 0, single buffered']
    #allocation3 [shape = 's32[1]{0}', space=sflag, size = 0x4, scoped, tag = 'scoped memory for tpu_custom_call.1']
    #allocation4 [shape = 's32[1]{0}', space=sflag, size = 0x4, scoped, tag = 'scoped memory for tpu_custom_call.1']
    #allocation5 [shape = 'u8[16384]{0}', space=vmem, size = 0x4000, scoped, tag = 'input window, operand 1, single buffered']
    #allocation6 [shape = 's32[1]{0}', space=sflag, size = 0x4, scoped, tag = 'scoped memory for tpu_custom_call.1']
    #allocation7 [shape = 'u8[4096]{0}', space=vmem, size = 0x1000, scoped, tag = 'input window, operand 2, single buffered']
    #allocation8 [shape = 'u8[8192]{0}', space=vmem, size = 0x2000, scoped, tag = 'input window, operand 3, single buffered']
    #allocation9 [shape = 's32[1]{0}', space=sflag, size = 0x4, scoped, tag = 'scoped memory for tpu_custom_call.1']
    #allocation10 [shape = 'u8[8192]{0}', space=vmem, size = 0x2000, scoped, tag = 'input window, operand 4, single buffered']
    #allocation11 [shape = 'u8[8192]{0}', space=vmem, size = 0x2000, scoped, tag = 'output window, operand 0, single buffered']
    #allocation12 [shape = 'u8[16384]{0}', space=vmem, size = 0x4000, scoped, tag = 'output window, operand 1, single buffered']
    #allocation13 [shape = 's32[1]{0}', space=sflag, size = 0x4, scoped, tag = 'scoped memory for tpu_custom_call.1']
    %13 = vsyncpa [#allocation3], 0
    %14 = vsyncpa [#allocation6], 0
    %15 = vsyncpa [#allocation9], 0
    %16 = vsyncpa [#allocation4], 0
    %17 = vsyncpa [#allocation13], 0
    // Predicated region
    $region2: #{tpu_custom_call.1} parent=1 // pred_check
      _
    $region3: #{tpu_custom_call.1} parent=1 // pred_check_branch
      %19 = sbr.rel (0) target = $region5
    $region4: #{tpu_custom_call.1} parent=1 // pred_region
      %s21 = ssub.s32 256, 256
      %22 = vsyncadd [#allocation3], %s21
      %s23 = sshll.u32 [#allocation2], 4
      %s24 = int_to_ptr.vmem [resolvable:$true] %s23
      %29 = dma.hbm_to_vmem [thread:$0]  %s0, 256, %s24, [#allocation3], 128, 128, 8
    $region5: #{tpu_custom_call.1} parent=1 // pred_fallthru
      _
    // Predicated region
    $region6: #{tpu_custom_call.1} parent=1 // pred_check
      _
    $region7: #{tpu_custom_call.1} parent=1 // pred_check_branch
      %31 = sbr.rel (0) target = $region9
    $region8: #{tpu_custom_call.1} parent=1 // pred_region
      %s33 = ssub.s32 512, 512
      %34 = vsyncadd [#allocation6], %s33
      %s35 = sshll.u32 [#allocation5], 4
      %s36 = int_to_ptr.vmem [resolvable:$true] %s35
      %41 = dma.hbm_to_vmem [thread:$0]  %s1, 512, %s36, [#allocation6], 128, 128, 8
    $region9: #{tpu_custom_call.1} parent=1 // pred_fallthru
      _
    // Predicated region
    $region10: #{tpu_custom_call.1} parent=1 // pred_check
      _
    $region11: #{tpu_custom_call.1} parent=1 // pred_check_branch
      %43 = sbr.rel (0) target = $region13
    $region12: #{tpu_custom_call.1} parent=1 // pred_region
      %s45 = ssub.s32 128, 128
      %46 = vsyncadd [#allocation6], %s45
      %s47 = sshll.u32 [#allocation7], 4
      %s48 = int_to_ptr.vmem [resolvable:$true] %s47
      %53 = dma.hbm_to_vmem [thread:$0]  %s2, 128, %s48, [#allocation6], 64, 64, 4
    $region13: #{tpu_custom_call.1} parent=1 // pred_fallthru
      _
    // Predicated region
    $region14: #{tpu_custom_call.1} parent=1 // pred_check
      _
    $region15: #{tpu_custom_call.1} parent=1 // pred_check_branch
      %55 = sbr.rel (0) target = $region17
    $region16: #{tpu_custom_call.1} parent=1 // pred_region
      %s57 = ssub.s32 256, 256
      %58 = vsyncadd [#allocation9], %s57
      %s59 = sshll.u32 [#allocation8], 4
      %s60 = int_to_ptr.vmem [resolvable:$true] %s59
      %65 = dma.hbm_to_vmem [thread:$0]  %s3, 256, %s60, [#allocation9], 64, 64, 4
    $region17: #{tpu_custom_call.1} parent=1 // pred_fallthru
      _
    // Predicated region
    $region18: #{tpu_custom_call.1} parent=1 // pred_check
      _
    $region19: #{tpu_custom_call.1} parent=1 // pred_check_branch
      %67 = sbr.rel (0) target = $region21
    $region20: #{tpu_custom_call.1} parent=1 // pred_region
      %s69 = ssub.s32 256, 256
      %70 = vsyncadd [#allocation9], %s69
      %s71 = sshll.u32 [#allocation10], 4
      %s72 = int_to_ptr.vmem [resolvable:$true] %s71
      %77 = dma.hbm_to_vmem [thread:$0]  %s4, 256, %s72, [#allocation9], 64, 64, 4
    $region21: #{tpu_custom_call.1} parent=1 // pred_fallthru
      _
    // Predicated region
    $region22: #{tpu_custom_call.1} parent=1 // pred_check
      _
    $region23: #{tpu_custom_call.1} parent=1 // pred_check_branch
      %79 = sbr.rel (0) target = $region25
    $region24: #{tpu_custom_call.1} parent=1 // pred_region
      _
    $region25: #{tpu_custom_call.1} parent=1 // pred_fallthru
      _
    // Predicated region
    $region26: #{tpu_custom_call.1} parent=1 // pred_check
      _
    $region27: #{tpu_custom_call.1} parent=1 // pred_check_branch
      %81 = sbr.rel (0) target = $region29
    $region28: #{tpu_custom_call.1} parent=1 // pred_region
      %82 = dma.done [#allocation3], 256
    $region29: #{tpu_custom_call.1} parent=1 // pred_fallthru
      _
    // Predicated region
    $region30: #{tpu_custom_call.1} parent=1 // pred_check
      _
    $region31: #{tpu_custom_call.1} parent=1 // pred_check_branch
      %84 = sbr.rel (0) target = $region33
    $region32: #{tpu_custom_call.1} parent=1 // pred_region
      %85 = dma.done [#allocation6], 512
    $region33: #{tpu_custom_call.1} parent=1 // pred_fallthru
      _
    // Predicated region
    $region34: #{tpu_custom_call.1} parent=1 // pred_check
      _
    $region35: #{tpu_custom_call.1} parent=1 // pred_check_branch
      %87 = sbr.rel (0) target = $region37
    $region36: #{tpu_custom_call.1} parent=1 // pred_region
      %88 = dma.done [#allocation6], 128
    $region37: #{tpu_custom_call.1} parent=1 // pred_fallthru
      _
    // Predicated region
    $region38: #{tpu_custom_call.1} parent=1 // pred_check
      _
    $region39: #{tpu_custom_call.1} parent=1 // pred_check_branch
      %90 = sbr.rel (0) target = $region41
    $region40: #{tpu_custom_call.1} parent=1 // pred_region
      %91 = dma.done [#allocation9], 256
    $region41: #{tpu_custom_call.1} parent=1 // pred_fallthru
      _
    // Predicated region
    $region42: #{tpu_custom_call.1} parent=1 // pred_check
      _
    $region43: #{tpu_custom_call.1} parent=1 // pred_check_branch
      %93 = sbr.rel (0) target = $region45
    $region44: #{tpu_custom_call.1} parent=1 // pred_region
      %94 = dma.done [#allocation9], 256
    $region45: #{tpu_custom_call.1} parent=1 // pred_fallthru
      _
    %v96 = vld [vmem:[%s5] sm:$0xff]
    %v97 = vld [vmem:[#allocation2] sm:$0xff]
    %v98 = vld [vmem:[#allocation2 + $0x8] sm:$0xff]
    %v99 = vld [vmem:[#allocation7] sm:$0xf]
    %v100 = vld [vmem:[#allocation7 + $0x4] sm:$0xf]
    %v101 = vpack.c.bf16 %v98, %v97
    %v102 = vlaneseq
    %v103 = vshrl.u32 %v102, 7
    %v104 = vsub.s32 0, %v103
    %v105 = vrot.slane %v96, %v104
    %v108 = vunpack.c.l.b16 %v99
    %v109 = vunpack.c.l.b16 %v100
    %v110 = vpack.c.b16 %v109, %v108
    %vm112 = vcmask 130048
    %v114 = vsel %vm112, %v101, 0
    %116 = vmatprep.subr.bf16.mxu0 0
    %117 = vmatpush1.bf16.msra.mxu0 0
    %118 = vmatprep.subr.bf16.mxu0 0
    %119 = vmatpush1.bf16.msra.mxu0 0
    %120 = vmatprep.subr.bf16.mxu0 0
    %121 = vmatpush1.bf16.msra.mxu0 0
    %122 = vmatprep.subr.bf16.mxu0 0
    %123 = vmatpush1.bf16.msra.mxu0 0
    %124 = vmatprep.subr.bf16.mxu0 0
    %125 = vmatpush1.bf16.msra.mxu0 0
    %126 = vmatprep.subr.bf16.mxu0 0
    %127 = vmatpush1.bf16.msra.mxu0 0
    %128 = vmatprep.subr.bf16.mxu0 0
    %129 = vmatpush1.bf16.msra.mxu0 0
    %130 = vmatprep.subr.bf16.mxu0 0
    %131 = vmatpush1.bf16.msra.mxu0 %v110
    %132 = vmatprep.subr.bf16.mxu0 0
    %133 = vmatpush2.bf16.msra.mxu0 0
    %134 = vmatprep.subr.bf16.mxu0 0
    %135 = vmatpush2.bf16.msra.mxu0 0
    %136 = vmatprep.subr.bf16.mxu0 0
    %137 = vmatpush2.bf16.msra.mxu0 0
    %138 = vmatprep.subr.bf16.mxu0 0
    %139 = vmatpush2.bf16.msra.mxu0 0
    %140 = vmatprep.subr.bf16.mxu0 0
    %141 = vmatpush2.bf16.msra.mxu0 0
    %142 = vmatprep.subr.bf16.mxu0 0
    %143 = vmatpush2.bf16.msra.mxu0 0
    %144 = vmatprep.subr.bf16.mxu0 0
    %145 = vmatpush2.bf16.msra.mxu0 0
    %146 = vmatprep.subr.bf16.mxu0 0
    %147 = vmatpush2.bf16.msra.mxu0 0
    %148 = vmatprep.mubr.bf16.mxu0 0
    %149 = vmatmul.mubr.bf16.gmra.mxu0 %v114
    %v150 = vpop.f32.mrf.mxu0
    %v151 = vadd.f32 %v105, %v150
    %v152 = vpop.f32.mrf.mxu0
    %v153 = vpop.f32.mrf.mxu0
    %v154 = vadd.f32 %v105, %v153
    %v155 = vpop.f32.mrf.mxu0
    %156 = vdwg.mxu0
    %vm157 = vcmask 261120
    %158 = vst.msk [vmem:[#allocation11] sm:$0xff] %vm157, %v151
    %159 = vst.msk [vmem:[#allocation11 + $0x8] sm:$0xff] %vm157, %v154
    %v160 = vld [vmem:[#allocation5] sm:$0xff]
    %v161 = vld [vmem:[#allocation5 + $0x8] sm:$0xff]
    %v162 = vld [vmem:[#allocation5 + $0x10] sm:$0xff]
    %v163 = vld [vmem:[#allocation5 + $0x18] sm:$0xff]
    %v164 = vld [vmem:[#allocation8] sm:$0xf]
    %v165 = vld [vmem:[#allocation8 + $0x4] sm:$0xf]
    %v166 = vld [vmem:[#allocation8 + $0x8] sm:$0xf]
    %v167 = vld [vmem:[#allocation8 + $0xc] sm:$0xf]
    %v168 = vpack.c.bf16 %v161, %v160
    %v169 = vpack.c.bf16 %v163, %v162
    %v170 = vlaneseq
    %v171 = vshrl.u32 %v170, 7
    %v172 = vsub.s32 1, %v171
    %v173 = vrot.slane %v96, %v172
    %v178 = vunpack.c.l.b16 %v164
    %v179 = vunpack.c.l.b16 %v165
    %v180 = vunpack.c.l.b16 %v166
    %v181 = vunpack.c.l.b16 %v167
    %v182 = vpack.c.b16 %v179, %v178
    %v183 = vpack.c.b16 %v181, %v180
    %v187 = vsel %vm157, %v168, 0
    %v190 = vsel %vm157, %v169, 0
    %192 = vmatprep.subr.bf16.mxu0 0
    %193 = vmatpush1.bf16.msra.mxu0 0
    %194 = vmatprep.subr.bf16.mxu0 0
    %195 = vmatpush1.bf16.msra.mxu0 0
    %196 = vmatprep.subr.bf16.mxu0 0
    %197 = vmatpush1.bf16.msra.mxu0 0
    %198 = vmatprep.subr.bf16.mxu0 0
    %199 = vmatpush1.bf16.msra.mxu0 0
    %200 = vmatprep.subr.bf16.mxu0 0
    %201 = vmatpush1.bf16.msra.mxu0 0
    %202 = vmatprep.subr.bf16.mxu0 0
    %203 = vmatpush1.bf16.msra.mxu0 0
    %204 = vmatprep.subr.bf16.mxu0 0
    %205 = vmatpush1.bf16.msra.mxu0 %v183
    %206 = vmatprep.subr.bf16.mxu0 0
    %207 = vmatpush1.bf16.msra.mxu0 %v182
    %208 = vmatprep.subr.bf16.mxu0 0
    %209 = vmatpush2.bf16.msra.mxu0 0
    %210 = vmatprep.subr.bf16.mxu0 0
    %211 = vmatpush2.bf16.msra.mxu0 0
    %212 = vmatprep.subr.bf16.mxu0 0
    %213 = vmatpush2.bf16.msra.mxu0 0
    %214 = vmatprep.subr.bf16.mxu0 0
    %215 = vmatpush2.bf16.msra.mxu0 0
    %216 = vmatprep.subr.bf16.mxu0 0
    %217 = vmatpush2.bf16.msra.mxu0 0
    %218 = vmatprep.subr.bf16.mxu0 0
    %219 = vmatpush2.bf16.msra.mxu0 0
    %220 = vmatprep.subr.bf16.mxu0 0
    %221 = vmatpush2.bf16.msra.mxu0 0
    %222 = vmatprep.subr.bf16.mxu0 0
    %223 = vmatpush2.bf16.msra.mxu0 0
    %224 = vmatprep.mubr.bf16.mxu0 0
    %225 = vmatmul.mubr.bf16.gmra.mxu0 %v187
    %v226 = vpop.f32.mrf.mxu0
    %v227 = vadd.f32 %v173, %v226
    %v228 = vpop.f32.mrf.mxu0
    %v229 = vpop.f32.mrf.mxu0
    %v230 = vadd.f32 %v173, %v229
    %v231 = vpop.f32.mrf.mxu0
    %232 = vmatprep.mubr.bf16.mxu0 0
    %233 = vmatmul.mubr.bf16.gmra.mxu0 %v190
    %v234 = vpop.f32.mrf.mxu0
    %v235 = vadd.f32 %v173, %v234
    %v236 = vpop.f32.mrf.mxu0
    %v237 = vpop.f32.mrf.mxu0
    %v238 = vadd.f32 %v173, %v237
    %v239 = vpop.f32.mrf.mxu0
    %240 = vdwg.mxu0
    %vm241 = vcmp.gt.f32.partialorder %v227, 20.0
    %vm242 = vcmp.gt.f32.partialorder %v230, 20.0
    %vm243 = vcmp.gt.f32.partialorder %v235, 20.0
    %vm244 = vcmp.gt.f32.partialorder %v238, 20.0
    %v245 = vmin.f32 %v227, 20.0
    %v246 = vmin.f32 %v230, 20.0
    %v247 = vmin.f32 %v235, 20.0
    %v248 = vmin.f32 %v238, 20.0
    %v249 = vmul.f32 %v245, 1.442695
    %v250 = vpow.pop %v249
    %v251 = vmul.f32 %v246, 1.442695
    %v252 = vpow.pop %v251
    %v253 = vmul.f32 %v247, 1.442695
    %v254 = vpow.pop %v253
    %v255 = vmul.f32 %v248, 1.442695
    %v256 = vpow.pop %v255
    %v257 = vadd.f32 %v250, 1.0
    %v258 = vlog2.pop %v257
    %v259 = vmul.f32 %v258, 0.6931472
    %v260 = vmul.f32 -0.5, %v250
    %v261 = vadd.f32 %v260, 1.0
    %v262 = vmul.f32 %v261, %v250
    %v263 = vand.u32 2147483647, %v250
    %vm264 = vcmp.lt.f32.partialorder %v263, 0.0004427343
    %v265 = vsel %vm264, %v262, %v259
    %v266 = vadd.f32 %v252, 1.0
    %v267 = vlog2.pop %v266
    %v268 = vmul.f32 %v267, 0.6931472
    %v269 = vmul.f32 -0.5, %v252
    %v270 = vadd.f32 %v269, 1.0
    %v271 = vmul.f32 %v270, %v252
    %v272 = vand.u32 2147483647, %v252
    %vm273 = vcmp.lt.f32.partialorder %v272, 0.0004427343
    %v274 = vsel %vm273, %v271, %v268
    %v275 = vadd.f32 %v254, 1.0
    %v276 = vlog2.pop %v275
    %v277 = vmul.f32 %v276, 0.6931472
    %v278 = vmul.f32 -0.5, %v254
    %v279 = vadd.f32 %v278, 1.0
    %v280 = vmul.f32 %v279, %v254
    %v281 = vand.u32 2147483647, %v254
    %vm282 = vcmp.lt.f32.partialorder %v281, 0.0004427343
    %v283 = vsel %vm282, %v280, %v277
    %v284 = vadd.f32 %v256, 1.0
    %v285 = vlog2.pop %v284
    %v286 = vmul.f32 %v285, 0.6931472
    %v287 = vmul.f32 -0.5, %v256
    %v288 = vadd.f32 %v287, 1.0
    %v289 = vmul.f32 %v288, %v256
    %v290 = vand.u32 2147483647, %v256
    %vm291 = vcmp.lt.f32.partialorder %v290, 0.0004427343
    %v292 = vsel %vm291, %v289, %v286
    %v293 = vsel %vm241, %v227, %v265
    %v294 = vsel %vm242, %v230, %v274
    %v295 = vsel %vm243, %v235, %v283
    %v296 = vsel %vm244, %v238, %v292
    %v297 = vld [vmem:[#allocation10] sm:$0xf]
    %v298 = vld [vmem:[#allocation10 + $0x4] sm:$0xf]
    %v299 = vld [vmem:[#allocation10 + $0x8] sm:$0xf]
    %v300 = vld [vmem:[#allocation10 + $0xc] sm:$0xf]
    %v301 = vpack.c.bf16 %v294, %v293
    %v302 = vpack.c.bf16 %v296, %v295
    %v303 = vlaneseq
    %v304 = vshrl.u32 %v303, 7
    %v305 = vsub.s32 2, %v304
    %v306 = vrot.slane %v96, %v305
    %v311 = vunpack.c.l.b16 %v297
    %v312 = vunpack.c.l.b16 %v298
    %v313 = vunpack.c.l.b16 %v299
    %v314 = vunpack.c.l.b16 %v300
    %v315 = vpack.c.b16 %v312, %v311
    %v316 = vpack.c.b16 %v314, %v313
    %v320 = vsel %vm157, %v301, 0
    %v323 = vsel %vm157, %v302, 0
    %325 = vmatprep.subr.bf16.mxu0 0
    %326 = vmatpush1.bf16.msra.mxu0 0
    %327 = vmatprep.subr.bf16.mxu0 0
    %328 = vmatpush1.bf16.msra.mxu0 0
    %329 = vmatprep.subr.bf16.mxu0 0
    %330 = vmatpush1.bf16.msra.mxu0 0
    %331 = vmatprep.subr.bf16.mxu0 0
    %332 = vmatpush1.bf16.msra.mxu0 0
    %333 = vmatprep.subr.bf16.mxu0 0
    %334 = vmatpush1.bf16.msra.mxu0 0
    %335 = vmatprep.subr.bf16.mxu0 0
    %336 = vmatpush1.bf16.msra.mxu0 0
    %337 = vmatprep.subr.bf16.mxu0 0
    %338 = vmatpush1.bf16.msra.mxu0 %v316
    %339 = vmatprep.subr.bf16.mxu0 0
    %340 = vmatpush1.bf16.msra.mxu0 %v315
    %341 = vmatprep.subr.bf16.mxu0 0
    %342 = vmatpush2.bf16.msra.mxu0 0
    %343 = vmatprep.subr.bf16.mxu0 0
    %344 = vmatpush2.bf16.msra.mxu0 0
    %345 = vmatprep.subr.bf16.mxu0 0
    %346 = vmatpush2.bf16.msra.mxu0 0
    %347 = vmatprep.subr.bf16.mxu0 0
    %348 = vmatpush2.bf16.msra.mxu0 0
    %349 = vmatprep.subr.bf16.mxu0 0
    %350 = vmatpush2.bf16.msra.mxu0 0
    %351 = vmatprep.subr.bf16.mxu0 0
    %352 = vmatpush2.bf16.msra.mxu0 0
    %353 = vmatprep.subr.bf16.mxu0 0
    %354 = vmatpush2.bf16.msra.mxu0 0
    %355 = vmatprep.subr.bf16.mxu0 0
    %356 = vmatpush2.bf16.msra.mxu0 0
    %357 = vmatprep.mubr.bf16.mxu0 0
    %358 = vmatmul.mubr.bf16.gmra.mxu0 %v320
    %v359 = vpop.f32.mrf.mxu0
    %v360 = vadd.f32 %v306, %v359
    %v361 = vpop.f32.mrf.mxu0
    %v362 = vpop.f32.mrf.mxu0
    %v363 = vadd.f32 %v306, %v362
    %v364 = vpop.f32.mrf.mxu0
    %365 = vmatprep.mubr.bf16.mxu0 0
    %366 = vmatmul.mubr.bf16.gmra.mxu0 %v323
    %v367 = vpop.f32.mrf.mxu0
    %v368 = vadd.f32 %v306, %v367
    %v369 = vpop.f32.mrf.mxu0
    %v370 = vpop.f32.mrf.mxu0
    %v371 = vadd.f32 %v306, %v370
    %v372 = vpop.f32.mrf.mxu0
    %373 = vdwg.mxu0
    %374 = vst.msk [vmem:[#allocation12] sm:$0xff] %vm157, %v360
    %375 = vst.msk [vmem:[#allocation12 + $0x8] sm:$0xff] %vm157, %v363
    %376 = vst.msk [vmem:[#allocation12 + $0x10] sm:$0xff] %vm157, %v368
    %377 = vst.msk [vmem:[#allocation12 + $0x18] sm:$0xff] %vm157, %v371
    // Predicated region
    $region46: #{tpu_custom_call.1} parent=1 // pred_check
      _
    $region47: #{tpu_custom_call.1} parent=1 // pred_check_branch
      %379 = sbr.rel (0) target = $region49
    $region48: #{tpu_custom_call.1} parent=1 // pred_region
      %s381 = ssub.s32 256, 256
      %382 = vsyncadd [#allocation4], %s381
      %s383 = sshll.u32 [#allocation11], 4
      %s384 = int_to_ptr.vmem [resolvable:$true] %s383
      %389 = dma.vmem_to_hbm [thread:$0]  %s384, 256, %s6, [#allocation4], 128, 128, 8
    $region49: #{tpu_custom_call.1} parent=1 // pred_fallthru
      _
    // Predicated region
    $region50: #{tpu_custom_call.1} parent=1 // pred_check
      _
    $region51: #{tpu_custom_call.1} parent=1 // pred_check_branch
      %391 = sbr.rel (0) target = $region53
    $region52: #{tpu_custom_call.1} parent=1 // pred_region
      %s393 = ssub.s32 512, 512
      %394 = vsyncadd [#allocation13], %s393
      %s395 = sshll.u32 [#allocation12], 4
      %s396 = int_to_ptr.vmem [resolvable:$true] %s395
      %401 = dma.vmem_to_hbm [thread:$0]  %s396, 512, %s7, [#allocation13], 128, 128, 8
    $region53: #{tpu_custom_call.1} parent=1 // pred_fallthru
      _
    // Predicated region
    $region54: #{tpu_custom_call.1} parent=1 // pred_check
      _
    $region55: #{tpu_custom_call.1} parent=1 // pred_check_branch
      %403 = sbr.rel (0) target = $region57
    $region56: #{tpu_custom_call.1} parent=1 // pred_region
      %404 = dma.done [#allocation4], 256
    $region57: #{tpu_custom_call.1} parent=1 // pred_fallthru
      _
    // Predicated region
    $region58: #{tpu_custom_call.1} parent=1 // pred_check
      _
    $region59: #{tpu_custom_call.1} parent=1 // pred_check_branch
      %406 = sbr.rel (0) target = $region61
    $region60: #{tpu_custom_call.1} parent=1 // pred_region
      %407 = dma.done [#allocation13], 512
    $region61: #{tpu_custom_call.1} parent=1 // pred_fallthru
      _
    %408 = vsyncpa [#allocation3], 1
    %409 = vsyncpa [#allocation6], 1
    %410 = vsyncpa [#allocation9], 1
    %411 = vsyncpa [#allocation4], 1
    %412 = vsyncpa [#allocation13], 1

</llo_original>
